<compile_context>
chip_gen: v6e
topology: v6e:2x2x1
jax: 0.10.0
libtpu: 0.0.40
codegen_flags: <defaults>
</compile_context>

<pallas_src>
import functools

import jax
import jax.numpy as jnp
from jax.experimental import pallas as pl
from jax.experimental.pallas import tpu as pltpu


def value_net_kernel(x_ref, w1_ref, b1_ref, w2_ref, b2_ref, out_ref):
    # fc1 on the MXU: cast the streamed x tile to bf16 in-register (free on the
    # VPU, hidden under DMA/MXU); accumulate in f32.
    x = x_ref[...].astype(jnp.bfloat16)
    h = jnp.dot(x, w1_ref[...], preferred_element_type=jnp.float32)
    h = jnp.maximum(h + b1_ref[...], 0.0)                      # bias + ReLU (VPU, f32)
    # fc2: VPU multiply against the (1, H) w2 row + XLU lane reduction
    # (avoids a wasted single-column MXU push/pop).
    o = jnp.sum(h * w2_ref[...], axis=-1, keepdims=True) + b2_ref[0]   # (TB, 1)
    # Lane-dense store: transpose the per-row column onto lanes (small XLU
    # relayout) so the writeback is unmasked full-lane stores + a dense DMA.
    out_ref[...] = o.T.reshape(out_ref.shape).astype(out_ref.dtype)


def _round_up(x, m):
    return ((x + m - 1) // m) * m


@functools.partial(jax.jit, static_argnames=("block_b",))
def value_net_forward(x, w1, b1, w2, b2, *, block_b=4096):
    """ValueNet forward: relu(x @ w1 + b1) @ w2 + b2  ->  (B, 1) float32.

    x:  (B, n_state)      w1: (n_state, n_hidden)   b1: (n_hidden,)
    w2: (n_hidden, 1)     b2: (1,)
    Weights are stored pre-transposed to (in, out) layout.
    """
    B, n_state = x.shape
    n_hidden = w1.shape[1]

    # ---- lane-pad the hidden dim to a 128 boundary (zero pad keeps results exact)
    H = _round_up(n_hidden, 128)
    if H != n_hidden:
        w1 = jnp.pad(w1, ((0, 0), (0, H - n_hidden)))
        b1 = jnp.pad(b1, (0, H - n_hidden))
        w2 = jnp.pad(w2, ((0, H - n_hidden), (0, 0)))

    # ---- batch tile: large tiles amortize the fixed per-step cost; cap so the
    # (TB, H) f32 hidden intermediate stays well inside VMEM on every gen
    # (v7x has only 64 MiB physical / 32 MiB default scoped VMEM).
    max_rows = max(16, (8 * 1024 * 1024) // (H * 4))
    TB = min(block_b, max_rows)
    TB = max(16, (TB // 16) * 16)        # multiple of 16 (bf16 sublane packing)
    if TB >= B:
        TB = B                           # single block covers the whole (small) batch
    nb = pl.cdiv(B, TB)                  # ragged tail -> Pallas partial last block

    # Tiny weights: bf16 for the MXU. x streams in its native dtype (no extra
    # HBM pass); the bf16 cast happens inside the kernel.
    # TODO(synk): on v7x, fp8(e4m3) x/w1 stored upstream would halve x traffic again.
    w1_bf = w1.astype(jnp.bfloat16)
    b1_2d = b1.reshape(1, H).astype(jnp.float32)
    w2_row = w2.reshape(1, H).astype(jnp.float32)   # fc2 weight as a lane-dense row
    b2_1d = b2.reshape(1).astype(jnp.float32)       # 1-D SMEM scalar

    cost = pl.CostEstimate(
        flops=2 * B * n_state * H + 4 * B * H,
        transcendentals=0,
        bytes_accessed=(B * n_state * x.dtype.itemsize   # x (native dtype, single pass)
                        + n_state * H * 2                # w1 (bf16)
                        + 2 * H * 4 + 4                  # b1, w2 row, b2
                        + B * 4),                        # output
    )

    out = pl.pallas_call(
        value_net_kernel,
        out_shape=jax.ShapeDtypeStruct((nb, 1, TB), jnp.float32),
        grid=(nb,),
        in_specs=[
            pl.BlockSpec((TB, n_state), lambda i: (i, 0)),      # x: streamed per tile
            pl.BlockSpec((n_state, H), lambda i: (0, 0)),       # w1: VMEM-resident
            pl.BlockSpec((1, H), lambda i: (0, 0)),             # b1: VMEM-resident
            pl.BlockSpec((1, H), lambda i: (0, 0)),             # w2 row: VMEM-resident
            pl.BlockSpec(memory_space=pltpu.MemorySpace.SMEM),  # b2: SMEM scalar
        ],
        out_specs=pl.BlockSpec((1, 1, TB), lambda i: (i, 0, 0)),  # lane-dense rows
        compiler_params=pltpu.CompilerParams(
            dimension_semantics=("parallel",),
            vmem_limit_bytes=32 * 1024 * 1024),
        cost_estimate=cost,
    )(x, w1_bf, b1_2d, w2_row, b2_1d)

    # (nb, 1, TB) lane-dense slab -> (B, 1); padded tail rows are discarded.
    return out.reshape(nb * TB, 1)[:B]


def init_params(key, n_state, n_hidden):
    """nn.Linear-style init (uniform +/- 1/sqrt(fan_in)), stored as (in, out)."""
    k1, k2, k3, k4 = jax.random.split(key, 4)
    bound1 = 1.0 / jnp.sqrt(n_state)
    bound2 = 1.0 / jnp.sqrt(n_hidden)
    w1 = jax.random.uniform(k1, (n_state, n_hidden), jnp.float32, -bound1, bound1)
    b1 = jax.random.uniform(k2, (n_hidden,), jnp.float32, -bound1, bound1)
    w2 = jax.random.uniform(k3, (n_hidden, 1), jnp.float32, -bound2, bound2)
    b2 = jax.random.uniform(k4, (1,), jnp.float32, -bound2, bound2)
    return w1, b1, w2, b2


if __name__ == "__main__":
    key = jax.random.PRNGKey(0)
    kx, kx2, kp = jax.random.split(key, 3)

    B, n_state, n_hidden = 8, 16, 32   # small shapes consistent with the module
    x = jax.random.normal(kx, (B, n_state), jnp.float32)
    w1, b1, w2, b2 = init_params(kp, n_state, n_hidden)

    out = value_net_forward(x, w1, b1, w2, b2)
    jax.block_until_ready(out)

    # Pure-JAX f32 reference (kernel uses bf16 MXU inputs -> looser tolerance).
    ref = jnp.maximum(x @ w1 + b1, 0.0) @ w2 + b2
    assert out.shape == (B, 1)
    assert jnp.allclose(out, ref, atol=3e-2, rtol=3e-2), "mismatch vs reference"

    # Second check: multi-block grid with a ragged tail (partial last x block).
    B2 = 40
    x2 = jax.random.normal(kx2, (B2, n_state), jnp.float32)
    out2 = value_net_forward(x2, w1, b1, w2, b2, block_b=16)   # TB=16 -> 3 blocks
    jax.block_until_ready(out2)
    ref2 = jnp.maximum(x2 @ w1 + b1, 0.0) @ w2 + b2
    assert out2.shape == (B2, 1)
    assert jnp.allclose(out2, ref2, atol=3e-2, rtol=3e-2), "ragged-tail mismatch"

    print("KERNEL_OK")
</pallas_src>

<mosaic_0001>
module attributes {stable_mosaic.version = 11 : i64} {
  func.func @value_net_kernel(%arg0: i32, %arg1: memref<8x16xf32, #tpu.memory_space<vmem>>, %arg2: memref<16x128xbf16, #tpu.memory_space<vmem>>, %arg3: memref<1x128xf32, #tpu.memory_space<vmem>>, %arg4: memref<1x128xf32, #tpu.memory_space<vmem>>, %arg5: memref<1xf32, #tpu.memory_space<smem>>, %arg6: memref<1x1x8xf32, #tpu.memory_space<vmem>>) attributes {dimension_semantics = [#tpu.dimension_semantics<parallel>], iteration_bounds = array<i64: 1>, scalar_prefetch = 0 : i64, scratch_operands = 0 : i64, tpu.core_type = #tpu.core_type<tc>, window_params = [{transform_indices = @transform_0, window_bounds = array<i64: 8, 16>}, {pipeline_mode = #tpu.pipeline_mode<synchronous>, transform_indices = @transform_1, window_bounds = array<i64: 16, 128>}, {pipeline_mode = #tpu.pipeline_mode<synchronous>, transform_indices = @transform_2, window_bounds = array<i64: 1, 128>}, {pipeline_mode = #tpu.pipeline_mode<synchronous>, transform_indices = @transform_3, window_bounds = array<i64: 1, 128>}, {transform_indices = @transform_4, window_bounds = array<i64: 1>}, {transform_indices = @transform_5, window_bounds = array<i64: 1, 1, 8>}]} {
    %c0 = arith.constant 0 : index
    %c0_0 = arith.constant 0 : index
    %0 = vector.load %arg1[%c0, %c0_0] : memref<8x16xf32, #tpu.memory_space<vmem>>, vector<8x16xf32>
    %1 = arith.truncf %0 : vector<8x16xf32> to vector<8x16xbf16>
    %c0_1 = arith.constant 0 : index
    %c0_2 = arith.constant 0 : index
    %2 = vector.load %arg2[%c0_1, %c0_2] : memref<16x128xbf16, #tpu.memory_space<vmem>>, vector<16x128xbf16>
    %cst = arith.constant dense<0.000000e+00> : vector<8x128xf32>
    %3 = tpu.matmul %1, %2, %cst {dimension_numbers = #tpu.dot_dimension_numbers<[1], [0], [0], [1], [0, 0, 1, 1], [], []>} : vector<8x16xbf16>, vector<16x128xbf16>, vector<8x128xf32> -> vector<8x128xf32>
    %c0_3 = arith.constant 0 : index
    %c0_4 = arith.constant 0 : index
    %4 = vector.load %arg3[%c0_3, %c0_4] : memref<1x128xf32, #tpu.memory_space<vmem>>, vector<1x128xf32>
    %5 = vector.broadcast %4 : vector<1x128xf32> to vector<8x128xf32>
    %6 = arith.addf %3, %5 : vector<8x128xf32>
    %cst_5 = arith.constant 0.000000e+00 : f32
    %7 = vector.broadcast %cst_5 : f32 to vector<8x128xf32>
    %8 = arith.maximumf %6, %7 : vector<8x128xf32>
    %c0_6 = arith.constant 0 : index
    %c0_7 = arith.constant 0 : index
    %9 = vector.load %arg4[%c0_6, %c0_7] : memref<1x128xf32, #tpu.memory_space<vmem>>, vector<1x128xf32>
    %10 = vector.broadcast %9 : vector<1x128xf32> to vector<8x128xf32>
    %11 = arith.mulf %8, %10 : vector<8x128xf32>
    %cst_8 = arith.constant dense<0.000000e+00> : vector<8xf32>
    %12 = vector.multi_reduction <add>, %11, %cst_8 [1] : vector<8x128xf32> to vector<8xf32>
    %13 = vector.shape_cast %12 : vector<8xf32> to vector<8x1xf32>
    %c0_9 = arith.constant 0 : index
    %14 = memref.load %arg5[%c0_9] : memref<1xf32, #tpu.memory_space<smem>>
    %15 = vector.broadcast %14 : f32 to vector<8x1xf32>
    %16 = arith.addf %13, %15 : vector<8x1xf32>
    %17 = tpu.transpose %16, [1, 0] : vector<8x1xf32> -> vector<1x8xf32>
    %18 = vector.shape_cast %17 : vector<1x8xf32> to vector<1x1x8xf32>
    %c0_10 = arith.constant 0 : index
    %c0_11 = arith.constant 0 : index
    %c0_12 = arith.constant 0 : index
    %19 = vector.load %arg6[%c0_10, %c0_11, %c0_12] : memref<1x1x8xf32, #tpu.memory_space<vmem>>, vector<1x1x8xf32>
    tpu.vector_store %arg6[%c0_10, %c0_11, %c0_12], %18 {strides = array<i32>} : memref<1x1x8xf32, #tpu.memory_space<vmem>>, vector<1x1x8xf32>,
    return
  }
  func.func @transform_0(%arg0: i32) -> (i32, i32) {
    %c0_i32 = arith.constant 0 : i32
    %c0_i32_0 = arith.constant 0 : i32
    return %arg0, %c0_i32 : i32, i32
  }
  func.func @transform_1(%arg0: i32) -> (i32, i32) {
    %c0_i32 = arith.constant 0 : i32
    %c0_i32_0 = arith.constant 0 : i32
    %c0_i32_1 = arith.constant 0 : i32
    return %c0_i32, %c0_i32_0 : i32, i32
  }
  func.func @transform_2(%arg0: i32) -> (i32, i32) {
    %c0_i32 = arith.constant 0 : i32
    %c0_i32_0 = arith.constant 0 : i32
    %c0_i32_1 = arith.constant 0 : i32
    return %c0_i32, %c0_i32_0 : i32, i32
  }
  func.func @transform_3(%arg0: i32) -> (i32, i32) {
    %c0_i32 = arith.constant 0 : i32
    %c0_i32_0 = arith.constant 0 : i32
    %c0_i32_1 = arith.constant 0 : i32
    return %c0_i32, %c0_i32_0 : i32, i32
  }
  func.func @transform_4(%arg0: i32) -> i32 {
    %c0_i32 = arith.constant 0 : i32
    %c0_i32_0 = arith.constant 0 : i32
    return %c0_i32 : i32
  }
  func.func @transform_5(%arg0: i32) -> (i32, i32, i32) {
    %c0_i32 = arith.constant 0 : i32
    %c0_i32_0 = arith.constant 0 : i32
    %c0_i32_1 = arith.constant 0 : i32
    return %arg0, %c0_i32, %c0_i32_0 : i32, i32, i32
  }
}

</mosaic_0001>

<llo_original>
// kernel: value_net_forward.1
$region0: #{value_net_forward.1}
  #allocation0 [shape = 'u32[]', space=smem, size = 0x4, offset = 0x4, fixed_abs, tag = 'smem constant byte address 0x4 - core index']
  #allocation1 [shape = 'u32[144,128]{1,0:T(1,128)}', space=vmem, size = 0x12000, scoped, tag = 'internal scratch']
  #allocation2 [shape = 'f32[1]{0:T(128)S(6)}', space=smem, size = 0x200, scoped, tag = 'scoped memory for value_net_forward.1']
  %s0 = inlined_call_operand.vmem [shape: f32[8,16], index: 0, kind: input, shape index: {}]
  %s1 = inlined_call_operand.vmem [shape: bf16[16,128], index: 1, kind: input, shape index: {}]
  %s2 = inlined_call_operand.vmem [shape: f32[1,128], index: 2, kind: input, shape index: {}]
  %s3 = inlined_call_operand.vmem [shape: f32[1,128], index: 3, kind: input, shape index: {}]
  %s4 = inlined_call_operand.<no memory space> [shape: f32[1], index: 4, kind: input, shape index: {}]
  %s5 = inlined_call_operand.hbm [shape: f32[1,1,8], index: 5, kind: output, shape index: {}]
  %s6 = sld [smem:[#allocation0]]
  $region30: #{value_net_forward.1} parent=0
    _
  %s8 = ssub.s32 1, %s6
  %s9 = scalar_select 0, %s8, %s6
  %10 = sst [smem:[#allocation2]] %s4
  $region1: #{value_net_forward.1} parent=0
    #allocation3 [shape = 'u8[512]{0}', space=vmem, size = 0x400, scoped, tag = 'output window, operand 0, single buffered']
    #allocation4 [shape = 's32[1]{0}', space=sflag, size = 0x4, scoped, tag = 'scoped memory for value_net_forward.1']
    %11 = vsyncpa [#allocation4], 0
    // Predicated region
    $region2: #{value_net_forward.1} parent=1 // pred_check
      _
    $region3: #{value_net_forward.1} parent=1 // pred_check_branch
      %13 = sbr.rel (0) target = $region5
    $region4: #{value_net_forward.1} parent=1 // pred_region
      _
    $region5: #{value_net_forward.1} parent=1 // pred_fallthru
      _
    // Predicated region
    $region6: #{value_net_forward.1} parent=1 // pred_check
      _
    $region7: #{value_net_forward.1} parent=1 // pred_check_branch
      %15 = sbr.rel (0) target = $region9
    $region8: #{value_net_forward.1} parent=1 // pred_region
      _
    $region9: #{value_net_forward.1} parent=1 // pred_fallthru
      _
    // Predicated region
    $region10: #{value_net_forward.1} parent=1 // pred_check
      _
    $region11: #{value_net_forward.1} parent=1 // pred_check_branch
      %17 = sbr.rel (0) target = $region13
    $region12: #{value_net_forward.1} parent=1 // pred_region
      _
    $region13: #{value_net_forward.1} parent=1 // pred_fallthru
      _
    // Predicated region
    $region14: #{value_net_forward.1} parent=1 // pred_check
      _
    $region15: #{value_net_forward.1} parent=1 // pred_check_branch
      %19 = sbr.rel (0) target = $region17
    $region16: #{value_net_forward.1} parent=1 // pred_region
      _
    $region17: #{value_net_forward.1} parent=1 // pred_fallthru
      _
    // Predicated region
    $region18: #{value_net_forward.1} parent=1 // pred_check
      _
    $region19: #{value_net_forward.1} parent=1 // pred_check_branch
      %21 = sbr.rel (0) target = $region21
    $region20: #{value_net_forward.1} parent=1 // pred_region
      _
    $region21: #{value_net_forward.1} parent=1 // pred_fallthru
      _
    %v23 = vld [vmem:[%s0] sm:$0xff]
    %v24 = vpack.c.bf16 %v23, %v23
    %v25 = vld [vmem:[%s1] sm:$0xf]
    %v26 = vld [vmem:[%s1 + $0x4] sm:$0xf]
    %v27 = vld [vmem:[%s2] sm:$0x1]
    %v29 = vlaneseq
    %v30 = vshrl.u32 %v29, 7
    %v31 = vsub.s32 0, %v30
    %v32 = vrot.slane %v27, %v31
    %v36 = vunpack.c.l.b16 %v25
    %v37 = vunpack.c.l.b16 %v26
    %v38 = vpack.c.b16 %v37, %v36
    %vm40 = vcmask 130048
    %v42 = vsel %vm40, %v24, 0
    %44 = vmatprep.subr.bf16.mxu0 0
    %45 = vmatpush1.bf16.msra.mxu0 0
    %46 = vmatprep.subr.bf16.mxu0 0
    %47 = vmatpush1.bf16.msra.mxu0 0
    %48 = vmatprep.subr.bf16.mxu0 0
    %49 = vmatpush1.bf16.msra.mxu0 0
    %50 = vmatprep.subr.bf16.mxu0 0
    %51 = vmatpush1.bf16.msra.mxu0 0
    %52 = vmatprep.subr.bf16.mxu0 0
    %53 = vmatpush1.bf16.msra.mxu0 0
    %54 = vmatprep.subr.bf16.mxu0 0
    %55 = vmatpush1.bf16.msra.mxu0 0
    %56 = vmatprep.subr.bf16.mxu0 0
    %57 = vmatpush1.bf16.msra.mxu0 0
    %58 = vmatprep.subr.bf16.mxu0 0
    %59 = vmatpush1.bf16.msra.mxu0 %v38
    %60 = vmatprep.subr.bf16.mxu0 0
    %61 = vmatpush2.bf16.msra.mxu0 0
    %62 = vmatprep.subr.bf16.mxu0 0
    %63 = vmatpush2.bf16.msra.mxu0 0
    %64 = vmatprep.subr.bf16.mxu0 0
    %65 = vmatpush2.bf16.msra.mxu0 0
    %66 = vmatprep.subr.bf16.mxu0 0
    %67 = vmatpush2.bf16.msra.mxu0 0
    %68 = vmatprep.subr.bf16.mxu0 0
    %69 = vmatpush2.bf16.msra.mxu0 0
    %70 = vmatprep.subr.bf16.mxu0 0
    %71 = vmatpush2.bf16.msra.mxu0 0
    %72 = vmatprep.subr.bf16.mxu0 0
    %73 = vmatpush2.bf16.msra.mxu0 0
    %74 = vmatprep.subr.bf16.mxu0 0
    %75 = vmatpush2.bf16.msra.mxu0 0
    %76 = vmatprep.mubr.bf16.mxu0 0
    %77 = vmatmul.mubr.bf16.gmra.mxu0 %v42
    %v78 = vpop.f32.mrf.mxu0
    %v79 = vadd.f32 %v32, %v78
    %v80 = vpop.f32.mrf.mxu0
    %v81 = vpop.f32.mrf.mxu0
    %v82 = vpop.f32.mrf.mxu0
    %83 = vdwg.mxu0
    %v84 = vmax.f32 %v79, 0.0
    %v85 = vld [vmem:[%s3] sm:$0x1]
    %v87 = vlaneseq
    %v88 = vshrl.u32 %v87, 7
    %v89 = vsub.s32 0, %v88
    %v90 = vrot.slane %v85, %v89
    %v92 = vmul.f32 %v84, %v90
    %93 = vadd.xlane.f32.xlu0 %v92
    %v94 = vpop.xlane.xlu0 %93
    %s95 = sld [smem:[#allocation2]]
    %v96 = vstv %s95
    %v97 = vadd.f32 %v94, %v96
    %98 = vxpose.xlu0.b32.start [1/16] %v97, 128
    %99 = vxpose.xlu0.b32.cont [2/16] 0.0, 128
    %100 = vxpose.xlu0.b32.cont [3/16] 0.0, 128
    %101 = vxpose.xlu0.b32.cont [4/16] 0.0, 128
    %102 = vxpose.xlu0.b32.cont [5/16] 0.0, 128
    %103 = vxpose.xlu0.b32.cont [6/16] 0.0, 128
    %104 = vxpose.xlu0.b32.cont [7/16] 0.0, 128
    %105 = vxpose.xlu0.b32.cont [8/16] 0.0, 128
    %106 = vxpose.xlu0.b32.cont [9/16] 0.0, 128
    %107 = vxpose.xlu0.b32.cont [10/16] 0.0, 128
    %108 = vxpose.xlu0.b32.cont [11/16] 0.0, 128
    %109 = vxpose.xlu0.b32.cont [12/16] 0.0, 128
    %110 = vxpose.xlu0.b32.cont [13/16] 0.0, 128
    %111 = vxpose.xlu0.b32.cont [14/16] 0.0, 128
    %112 = vxpose.xlu0.b32.cont [15/16] 0.0, 128
    %113 = vxpose.xlu0.b32.end [16/16] 0.0, 128
    %v114 = vpop.trf.xlu0
    %v115 = vpop.trf.xlu0
    %v116 = vpop.trf.xlu0
    %v117 = vpop.trf.xlu0
    %v118 = vpop.trf.xlu0
    %v119 = vpop.trf.xlu0
    %v120 = vpop.trf.xlu0
    %v121 = vpop.trf.xlu0
    %v122 = vpop.trf.xlu0
    %v123 = vpop.trf.xlu0
    %v124 = vpop.trf.xlu0
    %v125 = vpop.trf.xlu0
    %v126 = vpop.trf.xlu0
    %v127 = vpop.trf.xlu0
    %v128 = vpop.trf.xlu0
    %v129 = vpop.trf.xlu0
    %vm130 = vcmask 57344
    %131 = vst.msk [vmem:[#allocation3] sm:$0x1] %vm130, %v114
    // Predicated region
    $region22: #{value_net_forward.1} parent=1 // pred_check
      _
    $region23: #{value_net_forward.1} parent=1 // pred_check_branch
      %133 = sbr.rel (0) target = $region25
    $region24: #{value_net_forward.1} parent=1 // pred_region
      %s135 = ssub.s32 16, 16
      %136 = vsyncadd [#allocation4], %s135
      %s138 = sshll.u32 [#allocation3], 4
      %s139 = int_to_ptr.vmem [resolvable:$true] %s138
      %141 = dma.vmem_to_hbm [thread:$0]  %s139, 16, %s5, [#allocation4]
    $region25: #{value_net_forward.1} parent=1 // pred_fallthru
      _
    // Predicated region
    $region26: #{value_net_forward.1} parent=1 // pred_check
      _
    $region27: #{value_net_forward.1} parent=1 // pred_check_branch
      %143 = sbr.rel (0) target = $region29
    $region28: #{value_net_forward.1} parent=1 // pred_region
      %144 = dma.done [#allocation4], 16
    $region29: #{value_net_forward.1} parent=1 // pred_fallthru
      _
    %145 = vsyncpa [#allocation4], 1

</llo_original>
